<compile_context>
chip_gen: v6e
topology: v6e:2x2x1
jax: 0.10.0
libtpu: 0.0.40
codegen_flags: <defaults>
</compile_context>

<pallas_src>
import jax
import jax.numpy as jnp
from jax import lax
from jax.experimental import pallas as pl
from jax.experimental.pallas import tpu as pltpu


def _rnn_fc_kernel(emb_ref, wih_ref, whh_ref, bih_ref, bhh_ref,
                   wfc_ref, bfc_ref, h0_ref, out_ref, hid_ref):
    # emb_ref: (B, T, E) batch-first (native torch layout)
    # wih_ref: (H, E), whh_ref: (H, H), bih/bhh: (1, H)
    # wfc_ref: (V, H), bfc_ref: (1, V), h0_ref: (B, H)
    # out_ref: (B, V)  -- min(relu(fc(h_T)), 5)
    # hid_ref: (B, H)  -- final hidden state
    B, T, E = emb_ref.shape
    H = whh_ref.shape[0]

    # --- hoisted input projection: ONE matmul for all timesteps + fused bias ---
    x2d = emb_ref[...].reshape(B * T, E)                      # layout-preserving
    b_rnn = bih_ref[...] + bhh_ref[...]                       # (1, H), once
    xw = lax.dot_general(x2d, wih_ref[...],
                         dimension_numbers=(((1,), (1,)), ((), ())),
                         preferred_element_type=jnp.float32)  # x @ W_ih^T
    xw = (xw + b_rnn).reshape(B, T, H)                        # bias folded once

    whh = whh_ref[...]
    h = h0_ref[...].astype(jnp.float32)

    # --- fully unrolled recurrence: one MXU push + add + tanh per step ---
    for t in range(T):                                        # T static & small
        hw = lax.dot_general(h, whh,
                             dimension_numbers=(((1,), (1,)), ((), ())),
                             preferred_element_type=jnp.float32)  # h @ W_hh^T
        h = jnp.tanh(xw[:, t, :] + hw)

    hid_ref[...] = h.astype(hid_ref.dtype)

    # --- fc + ModifiedReLU05: min(relu(x), 5) ---
    logits = lax.dot_general(h, wfc_ref[...],
                             dimension_numbers=(((1,), (1,)), ((), ())),
                             preferred_element_type=jnp.float32) + bfc_ref[...]
    out_ref[...] = jnp.minimum(jnp.maximum(logits, 0.0), 5.0).astype(out_ref.dtype)


def group_recommendation_rnn(embedded, params, hidden=None):
    """Matches GroupRecommendationRNN.forward.

    embedded: (B, T, E) batch-first, like the PyTorch module.
    Returns (output, hidden) with hidden: (1, B, H); output follows torch's
    fc(hidden).squeeze(0).squeeze(0) semantics.
    """
    B, T, E = embedded.shape
    H = params["w_hh"].shape[0]
    V = params["w_fc"].shape[0]
    if hidden is None:
        h0 = jnp.zeros((B, H), jnp.float32)
    else:
        h0 = hidden[0].astype(jnp.float32)

    vmem = pl.BlockSpec(memory_space=pltpu.MemorySpace.VMEM)
    out, h_final = pl.pallas_call(
        _rnn_fc_kernel,
        out_shape=(jax.ShapeDtypeStruct((B, V), jnp.float32),
                   jax.ShapeDtypeStruct((B, H), jnp.float32)),
        in_specs=[vmem] * 8,
        out_specs=(vmem, vmem),
    )(embedded.astype(jnp.float32),
      params["w_ih"], params["w_hh"],
      params["b_ih"][None, :], params["b_hh"][None, :],
      params["w_fc"], params["b_fc"][None, :],
      h0)

    # fc(hidden) in torch is (1, B, V); .squeeze(0).squeeze(0) drops the leading
    # 1 and then drops B only if B == 1.
    output = out[0] if B == 1 else out
    return output, h_final[None]


def _reference(embedded, params, hidden=None):
    """Pure-JAX reference of the PyTorch forward pass."""
    B, T, E = embedded.shape
    H = params["w_hh"].shape[0]
    h = jnp.zeros((B, H), jnp.float32) if hidden is None else hidden[0]
    for t in range(T):
        h = jnp.tanh(embedded[:, t, :] @ params["w_ih"].T + params["b_ih"]
                     + h @ params["w_hh"].T + params["b_hh"])
    out = h @ params["w_fc"].T + params["b_fc"]
    out = jnp.minimum(jnp.maximum(out, 0.0), 5.0)
    out = out[0] if B == 1 else out
    return out, h[None]


def init_params(key, vocab_size, embedding_dim, hidden_dim):
    # Deterministic init mimicking PyTorch's uniform(-1/sqrt(H), 1/sqrt(H)).
    ks = jax.random.split(key, 6)
    k = 1.0 / jnp.sqrt(hidden_dim)
    u = lambda kk, shape: jax.random.uniform(kk, shape, jnp.float32, -k, k)
    return {
        "w_ih": u(ks[0], (hidden_dim, embedding_dim)),
        "w_hh": u(ks[1], (hidden_dim, hidden_dim)),
        "b_ih": u(ks[2], (hidden_dim,)),
        "b_hh": u(ks[3], (hidden_dim,)),
        "w_fc": u(ks[4], (vocab_size, hidden_dim)),
        "b_fc": u(ks[5], (vocab_size,)),
    }


if __name__ == "__main__":
    vocab_size, embedding_dim, hidden_dim = 20, 16, 32
    batch, seq = 2, 8

    key = jax.random.PRNGKey(0)
    k_params, k_x = jax.random.split(key)
    params = init_params(k_params, vocab_size, embedding_dim, hidden_dim)
    embedded = jax.random.normal(k_x, (batch, seq, embedding_dim), jnp.float32)

    fwd = jax.jit(group_recommendation_rnn)
    out, hidden = fwd(embedded, params)
    jax.block_until_ready((out, hidden))

    ref_out, ref_hidden = _reference(embedded, params)
    assert out.shape == ref_out.shape and hidden.shape == (1, batch, hidden_dim)
    assert jnp.allclose(out, ref_out, atol=1e-5)
    assert jnp.allclose(hidden, ref_hidden, atol=1e-5)

    print("KERNEL_OK")
</pallas_src>

<mosaic_0001>
module attributes {stable_mosaic.version = 11 : i64} {
  func.func @_rnn_fc_kernel(%arg0: memref<2x8x16xf32, #tpu.memory_space<vmem>>, %arg1: memref<32x16xf32, #tpu.memory_space<vmem>>, %arg2: memref<32x32xf32, #tpu.memory_space<vmem>>, %arg3: memref<1x32xf32, #tpu.memory_space<vmem>>, %arg4: memref<1x32xf32, #tpu.memory_space<vmem>>, %arg5: memref<20x32xf32, #tpu.memory_space<vmem>>, %arg6: memref<1x20xf32, #tpu.memory_space<vmem>>, %arg7: memref<2x32xf32, #tpu.memory_space<vmem>>, %arg8: memref<2x20xf32, #tpu.memory_space<vmem>>, %arg9: memref<2x32xf32, #tpu.memory_space<vmem>>) attributes {dimension_semantics = [], scalar_prefetch = 0 : i64, scratch_operands = 0 : i64, tpu.core_type = #tpu.core_type<tc>} {
    %c0 = arith.constant 0 : index
    %c0_0 = arith.constant 0 : index
    %c0_1 = arith.constant 0 : index
    %0 = vector.load %arg0[%c0, %c0_0, %c0_1] : memref<2x8x16xf32, #tpu.memory_space<vmem>>, vector<2x8x16xf32>
    %1 = vector.shape_cast %0 : vector<2x8x16xf32> to vector<16x16xf32>
    %c0_2 = arith.constant 0 : index
    %c0_3 = arith.constant 0 : index
    %2 = vector.load %arg3[%c0_2, %c0_3] : memref<1x32xf32, #tpu.memory_space<vmem>>, vector<1x32xf32>
    %c0_4 = arith.constant 0 : index
    %c0_5 = arith.constant 0 : index
    %3 = vector.load %arg4[%c0_4, %c0_5] : memref<1x32xf32, #tpu.memory_space<vmem>>, vector<1x32xf32>
    %4 = arith.addf %2, %3 : vector<1x32xf32>
    %c0_6 = arith.constant 0 : index
    %c0_7 = arith.constant 0 : index
    %5 = vector.load %arg1[%c0_6, %c0_7] : memref<32x16xf32, #tpu.memory_space<vmem>>, vector<32x16xf32>
    %cst = arith.constant dense<0.000000e+00> : vector<16x32xf32>
    %6 = tpu.matmul %1, %5, %cst {dimension_numbers = #tpu.dot_dimension_numbers<[1], [1], [0], [0], [0, 0, 1, 0], [], []>} : vector<16x16xf32>, vector<32x16xf32>, vector<16x32xf32> -> vector<16x32xf32>
    %7 = vector.broadcast %4 : vector<1x32xf32> to vector<16x32xf32>
    %8 = arith.addf %6, %7 : vector<16x32xf32>
    %9 = vector.shape_cast %8 : vector<16x32xf32> to vector<2x8x32xf32>
    %c0_8 = arith.constant 0 : index
    %c0_9 = arith.constant 0 : index
    %10 = vector.load %arg2[%c0_8, %c0_9] : memref<32x32xf32, #tpu.memory_space<vmem>>, vector<32x32xf32>
    %c0_10 = arith.constant 0 : index
    %c0_11 = arith.constant 0 : index
    %11 = vector.load %arg7[%c0_10, %c0_11] : memref<2x32xf32, #tpu.memory_space<vmem>>, vector<2x32xf32>
    %cst_12 = arith.constant dense<0.000000e+00> : vector<2x32xf32>
    %12 = tpu.matmul %11, %10, %cst_12 {dimension_numbers = #tpu.dot_dimension_numbers<[1], [1], [0], [0], [0, 0, 1, 0], [], []>} : vector<2x32xf32>, vector<32x32xf32>, vector<2x32xf32> -> vector<2x32xf32>
    %13 = vector.extract_strided_slice %9 {offsets = [0, 0, 0], sizes = [2, 1, 32], strides = [1, 1, 1]} : vector<2x8x32xf32> to vector<2x1x32xf32>
    %14 = vector.shape_cast %13 : vector<2x1x32xf32> to vector<2x32xf32>
    %15 = arith.addf %14, %12 : vector<2x32xf32>
    %16 = math.tanh %15 : vector<2x32xf32>
    %cst_13 = arith.constant dense<0.000000e+00> : vector<2x32xf32>
    %17 = tpu.matmul %16, %10, %cst_13 {dimension_numbers = #tpu.dot_dimension_numbers<[1], [1], [0], [0], [0, 0, 1, 0], [], []>} : vector<2x32xf32>, vector<32x32xf32>, vector<2x32xf32> -> vector<2x32xf32>
    %18 = vector.extract_strided_slice %9 {offsets = [0, 1, 0], sizes = [2, 1, 32], strides = [1, 1, 1]} : vector<2x8x32xf32> to vector<2x1x32xf32>
    %19 = vector.shape_cast %18 : vector<2x1x32xf32> to vector<2x32xf32>
    %20 = arith.addf %19, %17 : vector<2x32xf32>
    %21 = math.tanh %20 : vector<2x32xf32>
    %cst_14 = arith.constant dense<0.000000e+00> : vector<2x32xf32>
    %22 = tpu.matmul %21, %10, %cst_14 {dimension_numbers = #tpu.dot_dimension_numbers<[1], [1], [0], [0], [0, 0, 1, 0], [], []>} : vector<2x32xf32>, vector<32x32xf32>, vector<2x32xf32> -> vector<2x32xf32>
    %23 = vector.extract_strided_slice %9 {offsets = [0, 2, 0], sizes = [2, 1, 32], strides = [1, 1, 1]} : vector<2x8x32xf32> to vector<2x1x32xf32>
    %24 = vector.shape_cast %23 : vector<2x1x32xf32> to vector<2x32xf32>
    %25 = arith.addf %24, %22 : vector<2x32xf32>
    %26 = math.tanh %25 : vector<2x32xf32>
    %cst_15 = arith.constant dense<0.000000e+00> : vector<2x32xf32>
    %27 = tpu.matmul %26, %10, %cst_15 {dimension_numbers = #tpu.dot_dimension_numbers<[1], [1], [0], [0], [0, 0, 1, 0], [], []>} : vector<2x32xf32>, vector<32x32xf32>, vector<2x32xf32> -> vector<2x32xf32>
    %28 = vector.extract_strided_slice %9 {offsets = [0, 3, 0], sizes = [2, 1, 32], strides = [1, 1, 1]} : vector<2x8x32xf32> to vector<2x1x32xf32>
    %29 = vector.shape_cast %28 : vector<2x1x32xf32> to vector<2x32xf32>
    %30 = arith.addf %29, %27 : vector<2x32xf32>
    %31 = math.tanh %30 : vector<2x32xf32>
    %cst_16 = arith.constant dense<0.000000e+00> : vector<2x32xf32>
    %32 = tpu.matmul %31, %10, %cst_16 {dimension_numbers = #tpu.dot_dimension_numbers<[1], [1], [0], [0], [0, 0, 1, 0], [], []>} : vector<2x32xf32>, vector<32x32xf32>, vector<2x32xf32> -> vector<2x32xf32>
    %33 = vector.extract_strided_slice %9 {offsets = [0, 4, 0], sizes = [2, 1, 32], strides = [1, 1, 1]} : vector<2x8x32xf32> to vector<2x1x32xf32>
    %34 = vector.shape_cast %33 : vector<2x1x32xf32> to vector<2x32xf32>
    %35 = arith.addf %34, %32 : vector<2x32xf32>
    %36 = math.tanh %35 : vector<2x32xf32>
    %cst_17 = arith.constant dense<0.000000e+00> : vector<2x32xf32>
    %37 = tpu.matmul %36, %10, %cst_17 {dimension_numbers = #tpu.dot_dimension_numbers<[1], [1], [0], [0], [0, 0, 1, 0], [], []>} : vector<2x32xf32>, vector<32x32xf32>, vector<2x32xf32> -> vector<2x32xf32>
    %38 = vector.extract_strided_slice %9 {offsets = [0, 5, 0], sizes = [2, 1, 32], strides = [1, 1, 1]} : vector<2x8x32xf32> to vector<2x1x32xf32>
    %39 = vector.shape_cast %38 : vector<2x1x32xf32> to vector<2x32xf32>
    %40 = arith.addf %39, %37 : vector<2x32xf32>
    %41 = math.tanh %40 : vector<2x32xf32>
    %cst_18 = arith.constant dense<0.000000e+00> : vector<2x32xf32>
    %42 = tpu.matmul %41, %10, %cst_18 {dimension_numbers = #tpu.dot_dimension_numbers<[1], [1], [0], [0], [0, 0, 1, 0], [], []>} : vector<2x32xf32>, vector<32x32xf32>, vector<2x32xf32> -> vector<2x32xf32>
    %43 = vector.extract_strided_slice %9 {offsets = [0, 6, 0], sizes = [2, 1, 32], strides = [1, 1, 1]} : vector<2x8x32xf32> to vector<2x1x32xf32>
    %44 = vector.shape_cast %43 : vector<2x1x32xf32> to vector<2x32xf32>
    %45 = arith.addf %44, %42 : vector<2x32xf32>
    %46 = math.tanh %45 : vector<2x32xf32>
    %cst_19 = arith.constant dense<0.000000e+00> : vector<2x32xf32>
    %47 = tpu.matmul %46, %10, %cst_19 {dimension_numbers = #tpu.dot_dimension_numbers<[1], [1], [0], [0], [0, 0, 1, 0], [], []>} : vector<2x32xf32>, vector<32x32xf32>, vector<2x32xf32> -> vector<2x32xf32>
    %48 = vector.extract_strided_slice %9 {offsets = [0, 7, 0], sizes = [2, 1, 32], strides = [1, 1, 1]} : vector<2x8x32xf32> to vector<2x1x32xf32>
    %49 = vector.shape_cast %48 : vector<2x1x32xf32> to vector<2x32xf32>
    %50 = arith.addf %49, %47 : vector<2x32xf32>
    %51 = math.tanh %50 : vector<2x32xf32>
    %c0_20 = arith.constant 0 : index
    %c0_21 = arith.constant 0 : index
    %52 = vector.load %arg9[%c0_20, %c0_21] : memref<2x32xf32, #tpu.memory_space<vmem>>, vector<2x32xf32>
    tpu.vector_store %arg9[%c0_20, %c0_21], %51 {strides = array<i32>} : memref<2x32xf32, #tpu.memory_space<vmem>>, vector<2x32xf32>,
    %c0_22 = arith.constant 0 : index
    %c0_23 = arith.constant 0 : index
    %53 = vector.load %arg5[%c0_22, %c0_23] : memref<20x32xf32, #tpu.memory_space<vmem>>, vector<20x32xf32>
    %cst_24 = arith.constant dense<0.000000e+00> : vector<2x20xf32>
    %54 = tpu.matmul %51, %53, %cst_24 {dimension_numbers = #tpu.dot_dimension_numbers<[1], [1], [0], [0], [0, 0, 1, 0], [], []>} : vector<2x32xf32>, vector<20x32xf32>, vector<2x20xf32> -> vector<2x20xf32>
    %c0_25 = arith.constant 0 : index
    %c0_26 = arith.constant 0 : index
    %55 = vector.load %arg6[%c0_25, %c0_26] : memref<1x20xf32, #tpu.memory_space<vmem>>, vector<1x20xf32>
    %56 = vector.broadcast %55 : vector<1x20xf32> to vector<2x20xf32>
    %57 = arith.addf %54, %56 : vector<2x20xf32>
    %cst_27 = arith.constant 0.000000e+00 : f32
    %58 = vector.broadcast %cst_27 : f32 to vector<2x20xf32>
    %59 = arith.maximumf %57, %58 : vector<2x20xf32>
    %cst_28 = arith.constant 5.000000e+00 : f32
    %60 = vector.broadcast %cst_28 : f32 to vector<2x20xf32>
    %61 = arith.minimumf %59, %60 : vector<2x20xf32>
    %c0_29 = arith.constant 0 : index
    %c0_30 = arith.constant 0 : index
    %62 = vector.load %arg8[%c0_29, %c0_30] : memref<2x20xf32, #tpu.memory_space<vmem>>, vector<2x20xf32>
    tpu.vector_store %arg8[%c0_29, %c0_30], %61 {strides = array<i32>} : memref<2x20xf32, #tpu.memory_space<vmem>>, vector<2x20xf32>,
    return
  }
}

</mosaic_0001>

<llo_original>
// kernel: group_recommendation_rnn.1
$region0: #{group_recommendation_rnn.1}
  #allocation0 [shape = 'u32[]', space=smem, size = 0x4, offset = 0x4, fixed_abs, tag = 'smem constant byte address 0x4 - core index']
  #allocation1 [shape = 'u32[144,128]{1,0:T(1,128)}', space=vmem, size = 0x12000, scoped, tag = 'internal scratch']
  %s0 = inlined_call_operand.hbm [shape: f32[2,8,16], index: 0, kind: input, shape index: {}]
  %s1 = inlined_call_operand.vmem [shape: f32[32,16], index: 1, kind: input, shape index: {}]
  %s2 = inlined_call_operand.vmem [shape: f32[32,32], index: 2, kind: input, shape index: {}]
  %s3 = inlined_call_operand.vmem [shape: f32[1,32], index: 3, kind: input, shape index: {}]
  %s4 = inlined_call_operand.vmem [shape: f32[1,32], index: 4, kind: input, shape index: {}]
  %s5 = inlined_call_operand.vmem [shape: f32[20,32], index: 5, kind: input, shape index: {}]
  %s6 = inlined_call_operand.vmem [shape: f32[1,20], index: 6, kind: input, shape index: {}]
  %s7 = inlined_call_operand.vmem [shape: f32[2,32], index: 7, kind: input, shape index: {}]
  %s8 = inlined_call_operand.hbm [shape: f32[2,20], index: 8, kind: output, shape index: {0}]
  %s9 = inlined_call_operand.hbm [shape: f32[2,32], index: 9, kind: output, shape index: {1}]
  %10 = xla_tuple %s8, %s9
  %s11 = sld [smem:[#allocation0]]
  $region54: #{group_recommendation_rnn.1} parent=0
    _
  %s13 = ssub.s32 1, %s11
  %s14 = scalar_select 0, %s13, %s11
  $region1: #{group_recommendation_rnn.1} parent=0
    #allocation2 [shape = 'u8[8192]{0}', space=vmem, size = 0x2000, scoped, tag = 'input window, operand 0, single buffered']
    #allocation3 [shape = 's32[1]{0}', space=sflag, size = 0x4, scoped, tag = 'scoped memory for group_recommendation_rnn.1']
    #allocation4 [shape = 's32[1]{0}', space=sflag, size = 0x4, scoped, tag = 'scoped memory for group_recommendation_rnn.1']
    #allocation5 [shape = 'u8[1024]{0}', space=vmem, size = 0x400, scoped, tag = 'output window, operand 0, single buffered']
    #allocation6 [shape = 'u8[1024]{0}', space=vmem, size = 0x400, scoped, tag = 'output window, operand 1, single buffered']
    #allocation7 [shape = 's32[1]{0}', space=sflag, size = 0x4, scoped, tag = 'scoped memory for group_recommendation_rnn.1']
    %15 = vsyncpa [#allocation3], 0
    %16 = vsyncpa [#allocation4], 0
    %17 = vsyncpa [#allocation7], 0
    // Predicated region
    $region2: #{group_recommendation_rnn.1} parent=1 // pred_check
      _
    $region3: #{group_recommendation_rnn.1} parent=1 // pred_check_branch
      %19 = sbr.rel (0) target = $region5
    $region4: #{group_recommendation_rnn.1} parent=1 // pred_region
      %s21 = ssub.s32 256, 256
      %22 = vsyncadd [#allocation3], %s21
      %s23 = sshll.u32 [#allocation2], 4
      %s24 = int_to_ptr.vmem [resolvable:$true] %s23
      %29 = dma.hbm_to_vmem [thread:$0]  %s0, 256, %s24, [#allocation3], 128, 128, 8
    $region5: #{group_recommendation_rnn.1} parent=1 // pred_fallthru
      _
    // Predicated region
    $region6: #{group_recommendation_rnn.1} parent=1 // pred_check
      _
    $region7: #{group_recommendation_rnn.1} parent=1 // pred_check_branch
      %31 = sbr.rel (0) target = $region9
    $region8: #{group_recommendation_rnn.1} parent=1 // pred_region
      _
    $region9: #{group_recommendation_rnn.1} parent=1 // pred_fallthru
      _
    // Predicated region
    $region10: #{group_recommendation_rnn.1} parent=1 // pred_check
      _
    $region11: #{group_recommendation_rnn.1} parent=1 // pred_check_branch
      %33 = sbr.rel (0) target = $region13
    $region12: #{group_recommendation_rnn.1} parent=1 // pred_region
      _
    $region13: #{group_recommendation_rnn.1} parent=1 // pred_fallthru
      _
    // Predicated region
    $region14: #{group_recommendation_rnn.1} parent=1 // pred_check
      _
    $region15: #{group_recommendation_rnn.1} parent=1 // pred_check_branch
      %35 = sbr.rel (0) target = $region17
    $region16: #{group_recommendation_rnn.1} parent=1 // pred_region
      _
    $region17: #{group_recommendation_rnn.1} parent=1 // pred_fallthru
      _
    // Predicated region
    $region18: #{group_recommendation_rnn.1} parent=1 // pred_check
      _
    $region19: #{group_recommendation_rnn.1} parent=1 // pred_check_branch
      %37 = sbr.rel (0) target = $region21
    $region20: #{group_recommendation_rnn.1} parent=1 // pred_region
      _
    $region21: #{group_recommendation_rnn.1} parent=1 // pred_fallthru
      _
    // Predicated region
    $region22: #{group_recommendation_rnn.1} parent=1 // pred_check
      _
    $region23: #{group_recommendation_rnn.1} parent=1 // pred_check_branch
      %39 = sbr.rel (0) target = $region25
    $region24: #{group_recommendation_rnn.1} parent=1 // pred_region
      _
    $region25: #{group_recommendation_rnn.1} parent=1 // pred_fallthru
      _
    // Predicated region
    $region26: #{group_recommendation_rnn.1} parent=1 // pred_check
      _
    $region27: #{group_recommendation_rnn.1} parent=1 // pred_check_branch
      %41 = sbr.rel (0) target = $region29
    $region28: #{group_recommendation_rnn.1} parent=1 // pred_region
      _
    $region29: #{group_recommendation_rnn.1} parent=1 // pred_fallthru
      _
    // Predicated region
    $region30: #{group_recommendation_rnn.1} parent=1 // pred_check
      _
    $region31: #{group_recommendation_rnn.1} parent=1 // pred_check_branch
      %43 = sbr.rel (0) target = $region33
    $region32: #{group_recommendation_rnn.1} parent=1 // pred_region
      _
    $region33: #{group_recommendation_rnn.1} parent=1 // pred_fallthru
      _
    // Predicated region
    $region34: #{group_recommendation_rnn.1} parent=1 // pred_check
      _
    $region35: #{group_recommendation_rnn.1} parent=1 // pred_check_branch
      %45 = sbr.rel (0) target = $region37
    $region36: #{group_recommendation_rnn.1} parent=1 // pred_region
      %46 = dma.done [#allocation3], 256
    $region37: #{group_recommendation_rnn.1} parent=1 // pred_fallthru
      _
    %v47 = vld [vmem:[#allocation2] sm:$0xff]
    %v48 = vld [vmem:[#allocation2 + $0x8] sm:$0xff]
    %v49 = vld [vmem:[%s3] sm:$0x1]
    %v50 = vld [vmem:[%s4] sm:$0x1]
    %v51 = vadd.f32 %v49, %v50
    %v52 = vld [vmem:[%s1] sm:$0xff]
    %v53 = vld [vmem:[%s1 + $0x8] sm:$0xff]
    %v54 = vld [vmem:[%s1 + $0x10] sm:$0xff]
    %v55 = vld [vmem:[%s1 + $0x18] sm:$0xff]
    %v57 = vlaneseq
    %v58 = vshrl.u32 %v57, 7
    %v59 = vsub.s32 0, %v58
    %v60 = vrot.slane %v51, %v59
    %vm62 = vcmask 130048
    %v64 = vsel %vm62, %v47, 0
    %v67 = vsel %vm62, %v48, 0
    %v70 = vsel %vm62, %v52, 0
    %v73 = vsel %vm62, %v53, 0
    %v76 = vsel %vm62, %v54, 0
    %v79 = vsel %vm62, %v55, 0
    %81 = vmatprep.subr.mxu0 0.0
    %82 = vmatpush1.xpose.msra.mxu0 0.0
    %83 = vmatprep.subr.mxu0 0.0
    %84 = vmatpush1.xpose.msra.mxu0 0.0
    %85 = vmatprep.subr.mxu0 0.0
    %86 = vmatpush1.xpose.msra.mxu0 0.0
    %87 = vmatprep.subr.mxu0 0.0
    %88 = vmatpush1.xpose.msra.mxu0 0.0
    %89 = vmatprep.subr.mxu0 0.0
    %90 = vmatpush1.xpose.msra.mxu0 0.0
    %91 = vmatprep.subr.mxu0 0.0
    %92 = vmatpush1.xpose.msra.mxu0 0.0
    %93 = vmatprep.subr.mxu0 0.0
    %94 = vmatpush1.xpose.msra.mxu0 0.0
    %95 = vmatprep.subr.mxu0 0.0
    %96 = vmatpush1.xpose.msra.mxu0 0.0
    %97 = vmatprep.subr.mxu0 0.0
    %98 = vmatpush1.xpose.msra.mxu0 0.0
    %99 = vmatprep.subr.mxu0 0.0
    %100 = vmatpush1.xpose.msra.mxu0 0.0
    %101 = vmatprep.subr.mxu0 0.0
    %102 = vmatpush1.xpose.msra.mxu0 0.0
    %103 = vmatprep.subr.mxu0 0.0
    %104 = vmatpush1.xpose.msra.mxu0 0.0
    %105 = vmatprep.subr.mxu0 0.0
    %106 = vmatpush1.xpose.msra.mxu0 %v79
    %107 = vmatprep.subr.mxu0 0.0
    %108 = vmatpush1.xpose.msra.mxu0 %v76
    %109 = vmatprep.subr.mxu0 0.0
    %110 = vmatpush1.xpose.msra.mxu0 %v73
    %111 = vmatprep.subr.mxu0 0.0
    %112 = vmatpush1.xpose.msra.mxu0 %v70
    %113 = vmatprep.subr.mxu0 0.0
    %114 = vmatpush2.xpose.msra.mxu0 0.0
    %115 = vmatprep.subr.mxu0 0.0
    %116 = vmatpush2.xpose.msra.mxu0 0.0
    %117 = vmatprep.subr.mxu0 0.0
    %118 = vmatpush2.xpose.msra.mxu0 0.0
    %119 = vmatprep.subr.mxu0 0.0
    %120 = vmatpush2.xpose.msra.mxu0 0.0
    %121 = vmatprep.subr.mxu0 0.0
    %122 = vmatpush2.xpose.msra.mxu0 0.0
    %123 = vmatprep.subr.mxu0 0.0
    %124 = vmatpush2.xpose.msra.mxu0 0.0
    %125 = vmatprep.subr.mxu0 0.0
    %126 = vmatpush2.xpose.msra.mxu0 0.0
    %127 = vmatprep.subr.mxu0 0.0
    %128 = vmatpush2.xpose.msra.mxu0 0.0
    %129 = vmatprep.subr.mxu0 0.0
    %130 = vmatpush2.xpose.msra.mxu0 0.0
    %131 = vmatprep.subr.mxu0 0.0
    %132 = vmatpush2.xpose.msra.mxu0 0.0
    %133 = vmatprep.subr.mxu0 0.0
    %134 = vmatpush2.xpose.msra.mxu0 0.0
    %135 = vmatprep.subr.mxu0 0.0
    %136 = vmatpush2.xpose.msra.mxu0 0.0
    %137 = vmatprep.subr.mxu0 0.0
    %138 = vmatpush2.xpose.msra.mxu0 0.0
    %139 = vmatprep.subr.mxu0 0.0
    %140 = vmatpush2.xpose.msra.mxu0 0.0
    %141 = vmatprep.subr.mxu0 0.0
    %142 = vmatpush2.xpose.msra.mxu0 0.0
    %143 = vmatprep.subr.mxu0 0.0
    %144 = vmatpush2.xpose.msra.mxu0 0.0
    %145 = vmatprep.mubr.f32.mxu0 0.0
    %146 = vmatmul.mubr.f32.gmra.mxu0 %v64
    %v147 = vpop.f32.mrf.mxu0
    %v148 = vadd.f32 %v60, %v147
    %v149 = vpop.f32.mrf.mxu0
    %150 = vmatprep.mubr.f32.mxu0 0.0
    %151 = vmatmul.mubr.f32.gmra.mxu0 %v67
    %v152 = vpop.f32.mrf.mxu0
    %v153 = vadd.f32 %v60, %v152
    %v154 = vpop.f32.mrf.mxu0
    %155 = vdwg.mxu0
    %v156 = vld [vmem:[%s2] sm:$0xff]
    %v157 = vld [vmem:[%s2 + $0x8] sm:$0xff]
    %v158 = vld [vmem:[%s2 + $0x10] sm:$0xff]
    %v159 = vld [vmem:[%s2 + $0x18] sm:$0xff]
    %v160 = vld [vmem:[%s7] sm:$0x3]
    %vm161 = vcmask 261120
    %v163 = vsel %vm161, %v160, 0
    %v166 = vsel %vm161, %v156, 0
    %v169 = vsel %vm161, %v157, 0
    %v172 = vsel %vm161, %v158, 0
    %v175 = vsel %vm161, %v159, 0
    %177 = vmatprep.subr.mxu0 0.0
    %178 = vmatpush1.xpose.msra.mxu0 0.0
    %179 = vmatprep.subr.mxu0 0.0
    %180 = vmatpush1.xpose.msra.mxu0 0.0
    %181 = vmatprep.subr.mxu0 0.0
    %182 = vmatpush1.xpose.msra.mxu0 0.0
    %183 = vmatprep.subr.mxu0 0.0
    %184 = vmatpush1.xpose.msra.mxu0 0.0
    %185 = vmatprep.subr.mxu0 0.0
    %186 = vmatpush1.xpose.msra.mxu0 0.0
    %187 = vmatprep.subr.mxu0 0.0
    %188 = vmatpush1.xpose.msra.mxu0 0.0
    %189 = vmatprep.subr.mxu0 0.0
    %190 = vmatpush1.xpose.msra.mxu0 0.0
    %191 = vmatprep.subr.mxu0 0.0
    %192 = vmatpush1.xpose.msra.mxu0 0.0
    %193 = vmatprep.subr.mxu0 0.0
    %194 = vmatpush1.xpose.msra.mxu0 0.0
    %195 = vmatprep.subr.mxu0 0.0
    %196 = vmatpush1.xpose.msra.mxu0 0.0
    %197 = vmatprep.subr.mxu0 0.0
    %198 = vmatpush1.xpose.msra.mxu0 0.0
    %199 = vmatprep.subr.mxu0 0.0
    %200 = vmatpush1.xpose.msra.mxu0 0.0
    %201 = vmatprep.subr.mxu0 0.0
    %202 = vmatpush1.xpose.msra.mxu0 %v175
    %203 = vmatprep.subr.mxu0 0.0
    %204 = vmatpush1.xpose.msra.mxu0 %v172
    %205 = vmatprep.subr.mxu0 0.0
    %206 = vmatpush1.xpose.msra.mxu0 %v169
    %207 = vmatprep.subr.mxu0 0.0
    %208 = vmatpush1.xpose.msra.mxu0 %v166
    %209 = vmatprep.subr.mxu0 0.0
    %210 = vmatpush2.xpose.msra.mxu0 0.0
    %211 = vmatprep.subr.mxu0 0.0
    %212 = vmatpush2.xpose.msra.mxu0 0.0
    %213 = vmatprep.subr.mxu0 0.0
    %214 = vmatpush2.xpose.msra.mxu0 0.0
    %215 = vmatprep.subr.mxu0 0.0
    %216 = vmatpush2.xpose.msra.mxu0 0.0
    %217 = vmatprep.subr.mxu0 0.0
    %218 = vmatpush2.xpose.msra.mxu0 0.0
    %219 = vmatprep.subr.mxu0 0.0
    %220 = vmatpush2.xpose.msra.mxu0 0.0
    %221 = vmatprep.subr.mxu0 0.0
    %222 = vmatpush2.xpose.msra.mxu0 0.0
    %223 = vmatprep.subr.mxu0 0.0
    %224 = vmatpush2.xpose.msra.mxu0 0.0
    %225 = vmatprep.subr.mxu0 0.0
    %226 = vmatpush2.xpose.msra.mxu0 0.0
    %227 = vmatprep.subr.mxu0 0.0
    %228 = vmatpush2.xpose.msra.mxu0 0.0
    %229 = vmatprep.subr.mxu0 0.0
    %230 = vmatpush2.xpose.msra.mxu0 0.0
    %231 = vmatprep.subr.mxu0 0.0
    %232 = vmatpush2.xpose.msra.mxu0 0.0
    %233 = vmatprep.subr.mxu0 0.0
    %234 = vmatpush2.xpose.msra.mxu0 0.0
    %235 = vmatprep.subr.mxu0 0.0
    %236 = vmatpush2.xpose.msra.mxu0 0.0
    %237 = vmatprep.subr.mxu0 0.0
    %238 = vmatpush2.xpose.msra.mxu0 0.0
    %239 = vmatprep.subr.mxu0 0.0
    %240 = vmatpush2.xpose.msra.mxu0 0.0
    %241 = vmatprep.mubr.f32.mxu0 0.0
    %242 = vmatmul.mubr.f32.gmra.mxu0 %v163
    %v243 = vpop.f32.mrf.mxu0
    %v244 = vadd.f32 0.0, %v243
    %v245 = vpop.f32.mrf.mxu0
    %246 = vdwg.mxu0
    %v248 = vrot.slane %v244, 1
    %v251 = vadd.f32 %v148, %v244
    %v252 = vadd.f32 %v153, %v248
    %v253 = vtanh.pop %v251
    %v254 = vtanh.pop %v252
    %v257 = vrot.slane %v254, 7
    %vm258 = vcmask 1041409
    %v259 = vsel %vm258, %v257, %v253
    %v260 = vsel %vm161, %v259, 0
    %262 = vmatprep.subr.mxu0 0.0
    %263 = vmatpush1.xpose.msra.mxu0 0.0
    %264 = vmatprep.subr.mxu0 0.0
    %265 = vmatpush1.xpose.msra.mxu0 0.0
    %266 = vmatprep.subr.mxu0 0.0
    %267 = vmatpush1.xpose.msra.mxu0 0.0
    %268 = vmatprep.subr.mxu0 0.0
    %269 = vmatpush1.xpose.msra.mxu0 0.0
    %270 = vmatprep.subr.mxu0 0.0
    %271 = vmatpush1.xpose.msra.mxu0 0.0
    %272 = vmatprep.subr.mxu0 0.0
    %273 = vmatpush1.xpose.msra.mxu0 0.0
    %274 = vmatprep.subr.mxu0 0.0
    %275 = vmatpush1.xpose.msra.mxu0 0.0
    %276 = vmatprep.subr.mxu0 0.0
    %277 = vmatpush1.xpose.msra.mxu0 0.0
    %278 = vmatprep.subr.mxu0 0.0
    %279 = vmatpush1.xpose.msra.mxu0 0.0
    %280 = vmatprep.subr.mxu0 0.0
    %281 = vmatpush1.xpose.msra.mxu0 0.0
    %282 = vmatprep.subr.mxu0 0.0
    %283 = vmatpush1.xpose.msra.mxu0 0.0
    %284 = vmatprep.subr.mxu0 0.0
    %285 = vmatpush1.xpose.msra.mxu0 0.0
    %286 = vmatprep.subr.mxu0 0.0
    %287 = vmatpush1.xpose.msra.mxu0 %v175
    %288 = vmatprep.subr.mxu0 0.0
    %289 = vmatpush1.xpose.msra.mxu0 %v172
    %290 = vmatprep.subr.mxu0 0.0
    %291 = vmatpush1.xpose.msra.mxu0 %v169
    %292 = vmatprep.subr.mxu0 0.0
    %293 = vmatpush1.xpose.msra.mxu0 %v166
    %294 = vmatprep.subr.mxu0 0.0
    %295 = vmatpush2.xpose.msra.mxu0 0.0
    %296 = vmatprep.subr.mxu0 0.0
    %297 = vmatpush2.xpose.msra.mxu0 0.0
    %298 = vmatprep.subr.mxu0 0.0
    %299 = vmatpush2.xpose.msra.mxu0 0.0
    %300 = vmatprep.subr.mxu0 0.0
    %301 = vmatpush2.xpose.msra.mxu0 0.0
    %302 = vmatprep.subr.mxu0 0.0
    %303 = vmatpush2.xpose.msra.mxu0 0.0
    %304 = vmatprep.subr.mxu0 0.0
    %305 = vmatpush2.xpose.msra.mxu0 0.0
    %306 = vmatprep.subr.mxu0 0.0
    %307 = vmatpush2.xpose.msra.mxu0 0.0
    %308 = vmatprep.subr.mxu0 0.0
    %309 = vmatpush2.xpose.msra.mxu0 0.0
    %310 = vmatprep.subr.mxu0 0.0
    %311 = vmatpush2.xpose.msra.mxu0 0.0
    %312 = vmatprep.subr.mxu0 0.0
    %313 = vmatpush2.xpose.msra.mxu0 0.0
    %314 = vmatprep.subr.mxu0 0.0
    %315 = vmatpush2.xpose.msra.mxu0 0.0
    %316 = vmatprep.subr.mxu0 0.0
    %317 = vmatpush2.xpose.msra.mxu0 0.0
    %318 = vmatprep.subr.mxu0 0.0
    %319 = vmatpush2.xpose.msra.mxu0 0.0
    %320 = vmatprep.subr.mxu0 0.0
    %321 = vmatpush2.xpose.msra.mxu0 0.0
    %322 = vmatprep.subr.mxu0 0.0
    %323 = vmatpush2.xpose.msra.mxu0 0.0
    %324 = vmatprep.subr.mxu0 0.0
    %325 = vmatpush2.xpose.msra.mxu0 0.0
    %326 = vmatprep.mubr.f32.mxu0 0.0
    %327 = vmatmul.mubr.f32.gmra.mxu0 %v260
    %v328 = vpop.f32.mrf.mxu0
    %v329 = vadd.f32 0.0, %v328
    %v330 = vpop.f32.mrf.mxu0
    %331 = vdwg.mxu0
    %v333 = vrot.slane %v329, 7
    %v336 = vadd.f32 %v148, %v333
    %v337 = vadd.f32 %v153, %v329
    %v338 = vtanh.pop %v336
    %v339 = vtanh.pop %v337
    %v342 = vrot.slane %v338, 1
    %v343 = vsel %vm258, %v339, %v342
    %v344 = vsel %vm161, %v343, 0
    %346 = vmatprep.subr.mxu0 0.0
    %347 = vmatpush1.xpose.msra.mxu0 0.0
    %348 = vmatprep.subr.mxu0 0.0
    %349 = vmatpush1.xpose.msra.mxu0 0.0
    %350 = vmatprep.subr.mxu0 0.0
    %351 = vmatpush1.xpose.msra.mxu0 0.0
    %352 = vmatprep.subr.mxu0 0.0
    %353 = vmatpush1.xpose.msra.mxu0 0.0
    %354 = vmatprep.subr.mxu0 0.0
    %355 = vmatpush1.xpose.msra.mxu0 0.0
    %356 = vmatprep.subr.mxu0 0.0
    %357 = vmatpush1.xpose.msra.mxu0 0.0
    %358 = vmatprep.subr.mxu0 0.0
    %359 = vmatpush1.xpose.msra.mxu0 0.0
    %360 = vmatprep.subr.mxu0 0.0
    %361 = vmatpush1.xpose.msra.mxu0 0.0
    %362 = vmatprep.subr.mxu0 0.0
    %363 = vmatpush1.xpose.msra.mxu0 0.0
    %364 = vmatprep.subr.mxu0 0.0
    %365 = vmatpush1.xpose.msra.mxu0 0.0
    %366 = vmatprep.subr.mxu0 0.0
    %367 = vmatpush1.xpose.msra.mxu0 0.0
    %368 = vmatprep.subr.mxu0 0.0
    %369 = vmatpush1.xpose.msra.mxu0 0.0
    %370 = vmatprep.subr.mxu0 0.0
    %371 = vmatpush1.xpose.msra.mxu0 %v175
    %372 = vmatprep.subr.mxu0 0.0
    %373 = vmatpush1.xpose.msra.mxu0 %v172
    %374 = vmatprep.subr.mxu0 0.0
    %375 = vmatpush1.xpose.msra.mxu0 %v169
    %376 = vmatprep.subr.mxu0 0.0
    %377 = vmatpush1.xpose.msra.mxu0 %v166
    %378 = vmatprep.subr.mxu0 0.0
    %379 = vmatpush2.xpose.msra.mxu0 0.0
    %380 = vmatprep.subr.mxu0 0.0
    %381 = vmatpush2.xpose.msra.mxu0 0.0
    %382 = vmatprep.subr.mxu0 0.0
    %383 = vmatpush2.xpose.msra.mxu0 0.0
    %384 = vmatprep.subr.mxu0 0.0
    %385 = vmatpush2.xpose.msra.mxu0 0.0
    %386 = vmatprep.subr.mxu0 0.0
    %387 = vmatpush2.xpose.msra.mxu0 0.0
    %388 = vmatprep.subr.mxu0 0.0
    %389 = vmatpush2.xpose.msra.mxu0 0.0
    %390 = vmatprep.subr.mxu0 0.0
    %391 = vmatpush2.xpose.msra.mxu0 0.0
    %392 = vmatprep.subr.mxu0 0.0
    %393 = vmatpush2.xpose.msra.mxu0 0.0
    %394 = vmatprep.subr.mxu0 0.0
    %395 = vmatpush2.xpose.msra.mxu0 0.0
    %396 = vmatprep.subr.mxu0 0.0
    %397 = vmatpush2.xpose.msra.mxu0 0.0
    %398 = vmatprep.subr.mxu0 0.0
    %399 = vmatpush2.xpose.msra.mxu0 0.0
    %400 = vmatprep.subr.mxu0 0.0
    %401 = vmatpush2.xpose.msra.mxu0 0.0
    %402 = vmatprep.subr.mxu0 0.0
    %403 = vmatpush2.xpose.msra.mxu0 0.0
    %404 = vmatprep.subr.mxu0 0.0
    %405 = vmatpush2.xpose.msra.mxu0 0.0
    %406 = vmatprep.subr.mxu0 0.0
    %407 = vmatpush2.xpose.msra.mxu0 0.0
    %408 = vmatprep.subr.mxu0 0.0
    %409 = vmatpush2.xpose.msra.mxu0 0.0
    %410 = vmatprep.mubr.f32.mxu0 0.0
    %411 = vmatmul.mubr.f32.gmra.mxu0 %v344
    %v412 = vpop.f32.mrf.mxu0
    %v413 = vadd.f32 0.0, %v412
    %v414 = vpop.f32.mrf.mxu0
    %415 = vdwg.mxu0
    %v417 = vrot.slane %v413, 6
    %v418 = vrot.slane %v413, 7
    %v421 = vadd.f32 %v148, %v417
    %v422 = vadd.f32 %v153, %v418
    %v423 = vtanh.pop %v421
    %v424 = vtanh.pop %v422
    %v427 = vrot.slane %v423, 2
    %v428 = vrot.slane %v424, 1
    %v429 = vsel %vm258, %v428, %v427
    %v430 = vsel %vm161, %v429, 0
    %432 = vmatprep.subr.mxu0 0.0
    %433 = vmatpush1.xpose.msra.mxu0 0.0
    %434 = vmatprep.subr.mxu0 0.0
    %435 = vmatpush1.xpose.msra.mxu0 0.0
    %436 = vmatprep.subr.mxu0 0.0
    %437 = vmatpush1.xpose.msra.mxu0 0.0
    %438 = vmatprep.subr.mxu0 0.0
    %439 = vmatpush1.xpose.msra.mxu0 0.0
    %440 = vmatprep.subr.mxu0 0.0
    %441 = vmatpush1.xpose.msra.mxu0 0.0
    %442 = vmatprep.subr.mxu0 0.0
    %443 = vmatpush1.xpose.msra.mxu0 0.0
    %444 = vmatprep.subr.mxu0 0.0
    %445 = vmatpush1.xpose.msra.mxu0 0.0
    %446 = vmatprep.subr.mxu0 0.0
    %447 = vmatpush1.xpose.msra.mxu0 0.0
    %448 = vmatprep.subr.mxu0 0.0
    %449 = vmatpush1.xpose.msra.mxu0 0.0
    %450 = vmatprep.subr.mxu0 0.0
    %451 = vmatpush1.xpose.msra.mxu0 0.0
    %452 = vmatprep.subr.mxu0 0.0
    %453 = vmatpush1.xpose.msra.mxu0 0.0
    %454 = vmatprep.subr.mxu0 0.0
    %455 = vmatpush1.xpose.msra.mxu0 0.0
    %456 = vmatprep.subr.mxu0 0.0
    %457 = vmatpush1.xpose.msra.mxu0 %v175
    %458 = vmatprep.subr.mxu0 0.0
    %459 = vmatpush1.xpose.msra.mxu0 %v172
    %460 = vmatprep.subr.mxu0 0.0
    %461 = vmatpush1.xpose.msra.mxu0 %v169
    %462 = vmatprep.subr.mxu0 0.0
    %463 = vmatpush1.xpose.msra.mxu0 %v166
    %464 = vmatprep.subr.mxu0 0.0
    %465 = vmatpush2.xpose.msra.mxu0 0.0
    %466 = vmatprep.subr.mxu0 0.0
    %467 = vmatpush2.xpose.msra.mxu0 0.0
    %468 = vmatprep.subr.mxu0 0.0
    %469 = vmatpush2.xpose.msra.mxu0 0.0
    %470 = vmatprep.subr.mxu0 0.0
    %471 = vmatpush2.xpose.msra.mxu0 0.0
    %472 = vmatprep.subr.mxu0 0.0
    %473 = vmatpush2.xpose.msra.mxu0 0.0
    %474 = vmatprep.subr.mxu0 0.0
    %475 = vmatpush2.xpose.msra.mxu0 0.0
    %476 = vmatprep.subr.mxu0 0.0
    %477 = vmatpush2.xpose.msra.mxu0 0.0
    %478 = vmatprep.subr.mxu0 0.0
    %479 = vmatpush2.xpose.msra.mxu0 0.0
    %480 = vmatprep.subr.mxu0 0.0
    %481 = vmatpush2.xpose.msra.mxu0 0.0
    %482 = vmatprep.subr.mxu0 0.0
    %483 = vmatpush2.xpose.msra.mxu0 0.0
    %484 = vmatprep.subr.mxu0 0.0
    %485 = vmatpush2.xpose.msra.mxu0 0.0
    %486 = vmatprep.subr.mxu0 0.0
    %487 = vmatpush2.xpose.msra.mxu0 0.0
    %488 = vmatprep.subr.mxu0 0.0
    %489 = vmatpush2.xpose.msra.mxu0 0.0
    %490 = vmatprep.subr.mxu0 0.0
    %491 = vmatpush2.xpose.msra.mxu0 0.0
    %492 = vmatprep.subr.mxu0 0.0
    %493 = vmatpush2.xpose.msra.mxu0 0.0
    %494 = vmatprep.subr.mxu0 0.0
    %495 = vmatpush2.xpose.msra.mxu0 0.0
    %496 = vmatprep.mubr.f32.mxu0 0.0
    %497 = vmatmul.mubr.f32.gmra.mxu0 %v430
    %v498 = vpop.f32.mrf.mxu0
    %v499 = vadd.f32 0.0, %v498
    %v500 = vpop.f32.mrf.mxu0
    %501 = vdwg.mxu0
    %v503 = vrot.slane %v499, 5
    %v504 = vrot.slane %v499, 6
    %v507 = vadd.f32 %v148, %v503
    %v508 = vadd.f32 %v153, %v504
    %v509 = vtanh.pop %v507
    %v510 = vtanh.pop %v508
    %v513 = vrot.slane %v509, 3
    %v514 = vrot.slane %v510, 2
    %v515 = vsel %vm258, %v514, %v513
    %v516 = vsel %vm161, %v515, 0
    %518 = vmatprep.subr.mxu0 0.0
    %519 = vmatpush1.xpose.msra.mxu0 0.0
    %520 = vmatprep.subr.mxu0 0.0
    %521 = vmatpush1.xpose.msra.mxu0 0.0
    %522 = vmatprep.subr.mxu0 0.0
    %523 = vmatpush1.xpose.msra.mxu0 0.0
    %524 = vmatprep.subr.mxu0 0.0
    %525 = vmatpush1.xpose.msra.mxu0 0.0
    %526 = vmatprep.subr.mxu0 0.0
    %527 = vmatpush1.xpose.msra.mxu0 0.0
    %528 = vmatprep.subr.mxu0 0.0
    %529 = vmatpush1.xpose.msra.mxu0 0.0
    %530 = vmatprep.subr.mxu0 0.0
    %531 = vmatpush1.xpose.msra.mxu0 0.0
    %532 = vmatprep.subr.mxu0 0.0
    %533 = vmatpush1.xpose.msra.mxu0 0.0
    %534 = vmatprep.subr.mxu0 0.0
    %535 = vmatpush1.xpose.msra.mxu0 0.0
    %536 = vmatprep.subr.mxu0 0.0
    %537 = vmatpush1.xpose.msra.mxu0 0.0
    %538 = vmatprep.subr.mxu0 0.0
    %539 = vmatpush1.xpose.msra.mxu0 0.0
    %540 = vmatprep.subr.mxu0 0.0
    %541 = vmatpush1.xpose.msra.mxu0 0.0
    %542 = vmatprep.subr.mxu0 0.0
    %543 = vmatpush1.xpose.msra.mxu0 %v175
    %544 = vmatprep.subr.mxu0 0.0
    %545 = vmatpush1.xpose.msra.mxu0 %v172
    %546 = vmatprep.subr.mxu0 0.0
    %547 = vmatpush1.xpose.msra.mxu0 %v169
    %548 = vmatprep.subr.mxu0 0.0
    %549 = vmatpush1.xpose.msra.mxu0 %v166
    %550 = vmatprep.subr.mxu0 0.0
    %551 = vmatpush2.xpose.msra.mxu0 0.0
    %552 = vmatprep.subr.mxu0 0.0
    %553 = vmatpush2.xpose.msra.mxu0 0.0
    %554 = vmatprep.subr.mxu0 0.0
    %555 = vmatpush2.xpose.msra.mxu0 0.0
    %556 = vmatprep.subr.mxu0 0.0
    %557 = vmatpush2.xpose.msra.mxu0 0.0
    %558 = vmatprep.subr.mxu0 0.0
    %559 = vmatpush2.xpose.msra.mxu0 0.0
    %560 = vmatprep.subr.mxu0 0.0
    %561 = vmatpush2.xpose.msra.mxu0 0.0
    %562 = vmatprep.subr.mxu0 0.0
    %563 = vmatpush2.xpose.msra.mxu0 0.0
    %564 = vmatprep.subr.mxu0 0.0
    %565 = vmatpush2.xpose.msra.mxu0 0.0
    %566 = vmatprep.subr.mxu0 0.0
    %567 = vmatpush2.xpose.msra.mxu0 0.0
    %568 = vmatprep.subr.mxu0 0.0
    %569 = vmatpush2.xpose.msra.mxu0 0.0
    %570 = vmatprep.subr.mxu0 0.0
    %571 = vmatpush2.xpose.msra.mxu0 0.0
    %572 = vmatprep.subr.mxu0 0.0
    %573 = vmatpush2.xpose.msra.mxu0 0.0
    %574 = vmatprep.subr.mxu0 0.0
    %575 = vmatpush2.xpose.msra.mxu0 0.0
    %576 = vmatprep.subr.mxu0 0.0
    %577 = vmatpush2.xpose.msra.mxu0 0.0
    %578 = vmatprep.subr.mxu0 0.0
    %579 = vmatpush2.xpose.msra.mxu0 0.0
    %580 = vmatprep.subr.mxu0 0.0
    %581 = vmatpush2.xpose.msra.mxu0 0.0
    %582 = vmatprep.mubr.f32.mxu0 0.0
    %583 = vmatmul.mubr.f32.gmra.mxu0 %v516
    %v584 = vpop.f32.mrf.mxu0
    %v585 = vadd.f32 0.0, %v584
    %v586 = vpop.f32.mrf.mxu0
    %587 = vdwg.mxu0
    %v589 = vrot.slane %v585, 4
    %v590 = vrot.slane %v585, 5
    %v593 = vadd.f32 %v148, %v589
    %v594 = vadd.f32 %v153, %v590
    %v595 = vtanh.pop %v593
    %v596 = vtanh.pop %v594
    %v599 = vrot.slane %v595, 4
    %v600 = vrot.slane %v596, 3
    %v601 = vsel %vm258, %v600, %v599
    %v602 = vsel %vm161, %v601, 0
    %604 = vmatprep.subr.mxu0 0.0
    %605 = vmatpush1.xpose.msra.mxu0 0.0
    %606 = vmatprep.subr.mxu0 0.0
    %607 = vmatpush1.xpose.msra.mxu0 0.0
    %608 = vmatprep.subr.mxu0 0.0
    %609 = vmatpush1.xpose.msra.mxu0 0.0
    %610 = vmatprep.subr.mxu0 0.0
    %611 = vmatpush1.xpose.msra.mxu0 0.0
    %612 = vmatprep.subr.mxu0 0.0
    %613 = vmatpush1.xpose.msra.mxu0 0.0
    %614 = vmatprep.subr.mxu0 0.0
    %615 = vmatpush1.xpose.msra.mxu0 0.0
    %616 = vmatprep.subr.mxu0 0.0
    %617 = vmatpush1.xpose.msra.mxu0 0.0
    %618 = vmatprep.subr.mxu0 0.0
    %619 = vmatpush1.xpose.msra.mxu0 0.0
    %620 = vmatprep.subr.mxu0 0.0
    %621 = vmatpush1.xpose.msra.mxu0 0.0
    %622 = vmatprep.subr.mxu0 0.0
    %623 = vmatpush1.xpose.msra.mxu0 0.0
    %624 = vmatprep.subr.mxu0 0.0
    %625 = vmatpush1.xpose.msra.mxu0 0.0
    %626 = vmatprep.subr.mxu0 0.0
    %627 = vmatpush1.xpose.msra.mxu0 0.0
    %628 = vmatprep.subr.mxu0 0.0
    %629 = vmatpush1.xpose.msra.mxu0 %v175
    %630 = vmatprep.subr.mxu0 0.0
    %631 = vmatpush1.xpose.msra.mxu0 %v172
    %632 = vmatprep.subr.mxu0 0.0
    %633 = vmatpush1.xpose.msra.mxu0 %v169
    %634 = vmatprep.subr.mxu0 0.0
    %635 = vmatpush1.xpose.msra.mxu0 %v166
    %636 = vmatprep.subr.mxu0 0.0
    %637 = vmatpush2.xpose.msra.mxu0 0.0
    %638 = vmatprep.subr.mxu0 0.0
    %639 = vmatpush2.xpose.msra.mxu0 0.0
    %640 = vmatprep.subr.mxu0 0.0
    %641 = vmatpush2.xpose.msra.mxu0 0.0
    %642 = vmatprep.subr.mxu0 0.0
    %643 = vmatpush2.xpose.msra.mxu0 0.0
    %644 = vmatprep.subr.mxu0 0.0
    %645 = vmatpush2.xpose.msra.mxu0 0.0
    %646 = vmatprep.subr.mxu0 0.0
    %647 = vmatpush2.xpose.msra.mxu0 0.0
    %648 = vmatprep.subr.mxu0 0.0
    %649 = vmatpush2.xpose.msra.mxu0 0.0
    %650 = vmatprep.subr.mxu0 0.0
    %651 = vmatpush2.xpose.msra.mxu0 0.0
    %652 = vmatprep.subr.mxu0 0.0
    %653 = vmatpush2.xpose.msra.mxu0 0.0
    %654 = vmatprep.subr.mxu0 0.0
    %655 = vmatpush2.xpose.msra.mxu0 0.0
    %656 = vmatprep.subr.mxu0 0.0
    %657 = vmatpush2.xpose.msra.mxu0 0.0
    %658 = vmatprep.subr.mxu0 0.0
    %659 = vmatpush2.xpose.msra.mxu0 0.0
    %660 = vmatprep.subr.mxu0 0.0
    %661 = vmatpush2.xpose.msra.mxu0 0.0
    %662 = vmatprep.subr.mxu0 0.0
    %663 = vmatpush2.xpose.msra.mxu0 0.0
    %664 = vmatprep.subr.mxu0 0.0
    %665 = vmatpush2.xpose.msra.mxu0 0.0
    %666 = vmatprep.subr.mxu0 0.0
    %667 = vmatpush2.xpose.msra.mxu0 0.0
    %668 = vmatprep.mubr.f32.mxu0 0.0
    %669 = vmatmul.mubr.f32.gmra.mxu0 %v602
    %v670 = vpop.f32.mrf.mxu0
    %v671 = vadd.f32 0.0, %v670
    %v672 = vpop.f32.mrf.mxu0
    %673 = vdwg.mxu0
    %v675 = vrot.slane %v671, 3
    %v676 = vrot.slane %v671, 4
    %v679 = vadd.f32 %v148, %v675
    %v680 = vadd.f32 %v153, %v676
    %v681 = vtanh.pop %v679
    %v682 = vtanh.pop %v680
    %v685 = vrot.slane %v681, 5
    %v686 = vrot.slane %v682, 4
    %v687 = vsel %vm258, %v686, %v685
    %v688 = vsel %vm161, %v687, 0
    %690 = vmatprep.subr.mxu0 0.0
    %691 = vmatpush1.xpose.msra.mxu0 0.0
    %692 = vmatprep.subr.mxu0 0.0
    %693 = vmatpush1.xpose.msra.mxu0 0.0
    %694 = vmatprep.subr.mxu0 0.0
    %695 = vmatpush1.xpose.msra.mxu0 0.0
    %696 = vmatprep.subr.mxu0 0.0
    %697 = vmatpush1.xpose.msra.mxu0 0.0
    %698 = vmatprep.subr.mxu0 0.0
    %699 = vmatpush1.xpose.msra.mxu0 0.0
    %700 = vmatprep.subr.mxu0 0.0
    %701 = vmatpush1.xpose.msra.mxu0 0.0
    %702 = vmatprep.subr.mxu0 0.0
    %703 = vmatpush1.xpose.msra.mxu0 0.0
    %704 = vmatprep.subr.mxu0 0.0
    %705 = vmatpush1.xpose.msra.mxu0 0.0
    %706 = vmatprep.subr.mxu0 0.0
    %707 = vmatpush1.xpose.msra.mxu0 0.0
    %708 = vmatprep.subr.mxu0 0.0
    %709 = vmatpush1.xpose.msra.mxu0 0.0
    %710 = vmatprep.subr.mxu0 0.0
    %711 = vmatpush1.xpose.msra.mxu0 0.0
    %712 = vmatprep.subr.mxu0 0.0
    %713 = vmatpush1.xpose.msra.mxu0 0.0
    %714 = vmatprep.subr.mxu0 0.0
    %715 = vmatpush1.xpose.msra.mxu0 %v175
    %716 = vmatprep.subr.mxu0 0.0
    %717 = vmatpush1.xpose.msra.mxu0 %v172
    %718 = vmatprep.subr.mxu0 0.0
    %719 = vmatpush1.xpose.msra.mxu0 %v169
    %720 = vmatprep.subr.mxu0 0.0
    %721 = vmatpush1.xpose.msra.mxu0 %v166
    %722 = vmatprep.subr.mxu0 0.0
    %723 = vmatpush2.xpose.msra.mxu0 0.0
    %724 = vmatprep.subr.mxu0 0.0
    %725 = vmatpush2.xpose.msra.mxu0 0.0
    %726 = vmatprep.subr.mxu0 0.0
    %727 = vmatpush2.xpose.msra.mxu0 0.0
    %728 = vmatprep.subr.mxu0 0.0
    %729 = vmatpush2.xpose.msra.mxu0 0.0
    %730 = vmatprep.subr.mxu0 0.0
    %731 = vmatpush2.xpose.msra.mxu0 0.0
    %732 = vmatprep.subr.mxu0 0.0
    %733 = vmatpush2.xpose.msra.mxu0 0.0
    %734 = vmatprep.subr.mxu0 0.0
    %735 = vmatpush2.xpose.msra.mxu0 0.0
    %736 = vmatprep.subr.mxu0 0.0
    %737 = vmatpush2.xpose.msra.mxu0 0.0
    %738 = vmatprep.subr.mxu0 0.0
    %739 = vmatpush2.xpose.msra.mxu0 0.0
    %740 = vmatprep.subr.mxu0 0.0
    %741 = vmatpush2.xpose.msra.mxu0 0.0
    %742 = vmatprep.subr.mxu0 0.0
    %743 = vmatpush2.xpose.msra.mxu0 0.0
    %744 = vmatprep.subr.mxu0 0.0
    %745 = vmatpush2.xpose.msra.mxu0 0.0
    %746 = vmatprep.subr.mxu0 0.0
    %747 = vmatpush2.xpose.msra.mxu0 0.0
    %748 = vmatprep.subr.mxu0 0.0
    %749 = vmatpush2.xpose.msra.mxu0 0.0
    %750 = vmatprep.subr.mxu0 0.0
    %751 = vmatpush2.xpose.msra.mxu0 0.0
    %752 = vmatprep.subr.mxu0 0.0
    %753 = vmatpush2.xpose.msra.mxu0 0.0
    %754 = vmatprep.mubr.f32.mxu0 0.0
    %755 = vmatmul.mubr.f32.gmra.mxu0 %v688
    %v756 = vpop.f32.mrf.mxu0
    %v757 = vadd.f32 0.0, %v756
    %v758 = vpop.f32.mrf.mxu0
    %759 = vdwg.mxu0
    %v761 = vrot.slane %v757, 2
    %v762 = vrot.slane %v757, 3
    %v765 = vadd.f32 %v148, %v761
    %v766 = vadd.f32 %v153, %v762
    %v767 = vtanh.pop %v765
    %v768 = vtanh.pop %v766
    %v771 = vrot.slane %v767, 6
    %v772 = vrot.slane %v768, 5
    %v773 = vsel %vm258, %v772, %v771
    %v774 = vsel %vm161, %v773, 0
    %776 = vmatprep.subr.mxu0 0.0
    %777 = vmatpush1.xpose.msra.mxu0 0.0
    %778 = vmatprep.subr.mxu0 0.0
    %779 = vmatpush1.xpose.msra.mxu0 0.0
    %780 = vmatprep.subr.mxu0 0.0
    %781 = vmatpush1.xpose.msra.mxu0 0.0
    %782 = vmatprep.subr.mxu0 0.0
    %783 = vmatpush1.xpose.msra.mxu0 0.0
    %784 = vmatprep.subr.mxu0 0.0
    %785 = vmatpush1.xpose.msra.mxu0 0.0
    %786 = vmatprep.subr.mxu0 0.0
    %787 = vmatpush1.xpose.msra.mxu0 0.0
    %788 = vmatprep.subr.mxu0 0.0
    %789 = vmatpush1.xpose.msra.mxu0 0.0
    %790 = vmatprep.subr.mxu0 0.0
    %791 = vmatpush1.xpose.msra.mxu0 0.0
    %792 = vmatprep.subr.mxu0 0.0
    %793 = vmatpush1.xpose.msra.mxu0 0.0
    %794 = vmatprep.subr.mxu0 0.0
    %795 = vmatpush1.xpose.msra.mxu0 0.0
    %796 = vmatprep.subr.mxu0 0.0
    %797 = vmatpush1.xpose.msra.mxu0 0.0
    %798 = vmatprep.subr.mxu0 0.0
    %799 = vmatpush1.xpose.msra.mxu0 0.0
    %800 = vmatprep.subr.mxu0 0.0
    %801 = vmatpush1.xpose.msra.mxu0 %v175
    %802 = vmatprep.subr.mxu0 0.0
    %803 = vmatpush1.xpose.msra.mxu0 %v172
    %804 = vmatprep.subr.mxu0 0.0
    %805 = vmatpush1.xpose.msra.mxu0 %v169
    %806 = vmatprep.subr.mxu0 0.0
    %807 = vmatpush1.xpose.msra.mxu0 %v166
    %808 = vmatprep.subr.mxu0 0.0
    %809 = vmatpush2.xpose.msra.mxu0 0.0
    %810 = vmatprep.subr.mxu0 0.0
    %811 = vmatpush2.xpose.msra.mxu0 0.0
    %812 = vmatprep.subr.mxu0 0.0
    %813 = vmatpush2.xpose.msra.mxu0 0.0
    %814 = vmatprep.subr.mxu0 0.0
    %815 = vmatpush2.xpose.msra.mxu0 0.0
    %816 = vmatprep.subr.mxu0 0.0
    %817 = vmatpush2.xpose.msra.mxu0 0.0
    %818 = vmatprep.subr.mxu0 0.0
    %819 = vmatpush2.xpose.msra.mxu0 0.0
    %820 = vmatprep.subr.mxu0 0.0
    %821 = vmatpush2.xpose.msra.mxu0 0.0
    %822 = vmatprep.subr.mxu0 0.0
    %823 = vmatpush2.xpose.msra.mxu0 0.0
    %824 = vmatprep.subr.mxu0 0.0
    %825 = vmatpush2.xpose.msra.mxu0 0.0
    %826 = vmatprep.subr.mxu0 0.0
    %827 = vmatpush2.xpose.msra.mxu0 0.0
    %828 = vmatprep.subr.mxu0 0.0
    %829 = vmatpush2.xpose.msra.mxu0 0.0
    %830 = vmatprep.subr.mxu0 0.0
    %831 = vmatpush2.xpose.msra.mxu0 0.0
    %832 = vmatprep.subr.mxu0 0.0
    %833 = vmatpush2.xpose.msra.mxu0 0.0
    %834 = vmatprep.subr.mxu0 0.0
    %835 = vmatpush2.xpose.msra.mxu0 0.0
    %836 = vmatprep.subr.mxu0 0.0
    %837 = vmatpush2.xpose.msra.mxu0 0.0
    %838 = vmatprep.subr.mxu0 0.0
    %839 = vmatpush2.xpose.msra.mxu0 0.0
    %840 = vmatprep.mubr.f32.mxu0 0.0
    %841 = vmatmul.mubr.f32.gmra.mxu0 %v774
    %v842 = vpop.f32.mrf.mxu0
    %v843 = vadd.f32 0.0, %v842
    %v844 = vpop.f32.mrf.mxu0
    %845 = vdwg.mxu0
    %v847 = vrot.slane %v843, 1
    %v848 = vrot.slane %v843, 2
    %v851 = vadd.f32 %v148, %v847
    %v852 = vadd.f32 %v153, %v848
    %v853 = vtanh.pop %v851
    %v854 = vtanh.pop %v852
    %v857 = vrot.slane %v854, 7
    %vm860 = vcmask 261127
    %861 = vst.msk [vmem:[#allocation6 - $0x7] sm:$0x80] %vm860, %v853
    %vm862 = vcmask 253952
    %863 = vst.msk [vmem:[#allocation6 + $0x1] sm:$0x1] %vm862, %v857
    %v864 = vld [vmem:[%s5] sm:$0xff]
    %v865 = vld [vmem:[%s5 + $0x8] sm:$0xff]
    %v866 = vld [vmem:[%s5 + $0x10] sm:$0xf]
    %v867 = vld [vmem:[%s6] sm:$0x1]
    %v869 = vlaneseq
    %v870 = vshrl.u32 %v869, 7
    %v871 = vsub.s32 0, %v870
    %v872 = vrot.slane %v867, %v871
    %v874 = vrot.slane %v853, 7
    %v875 = vrot.slane %v854, 6
    %v876 = vsel %vm258, %v875, %v874
    %v877 = vsel %vm161, %v876, 0
    %v880 = vsel %vm161, %v864, 0
    %v883 = vsel %vm161, %v865, 0
    %v886 = vsel %vm161, %v866, 0
    %888 = vmatprep.subr.mxu0 0.0
    %889 = vmatpush1.xpose.msra.mxu0 0.0
    %890 = vmatprep.subr.mxu0 0.0
    %891 = vmatpush1.xpose.msra.mxu0 0.0
    %892 = vmatprep.subr.mxu0 0.0
    %893 = vmatpush1.xpose.msra.mxu0 0.0
    %894 = vmatprep.subr.mxu0 0.0
    %895 = vmatpush1.xpose.msra.mxu0 0.0
    %896 = vmatprep.subr.mxu0 0.0
    %897 = vmatpush1.xpose.msra.mxu0 0.0
    %898 = vmatprep.subr.mxu0 0.0
    %899 = vmatpush1.xpose.msra.mxu0 0.0
    %900 = vmatprep.subr.mxu0 0.0
    %901 = vmatpush1.xpose.msra.mxu0 0.0
    %902 = vmatprep.subr.mxu0 0.0
    %903 = vmatpush1.xpose.msra.mxu0 0.0
    %904 = vmatprep.subr.mxu0 0.0
    %905 = vmatpush1.xpose.msra.mxu0 0.0
    %906 = vmatprep.subr.mxu0 0.0
    %907 = vmatpush1.xpose.msra.mxu0 0.0
    %908 = vmatprep.subr.mxu0 0.0
    %909 = vmatpush1.xpose.msra.mxu0 0.0
    %910 = vmatprep.subr.mxu0 0.0
    %911 = vmatpush1.xpose.msra.mxu0 0.0
    %912 = vmatprep.subr.mxu0 0.0
    %913 = vmatpush1.xpose.msra.mxu0 0.0
    %914 = vmatprep.subr.mxu0 0.0
    %915 = vmatpush1.xpose.msra.mxu0 %v886
    %916 = vmatprep.subr.mxu0 0.0
    %917 = vmatpush1.xpose.msra.mxu0 %v883
    %918 = vmatprep.subr.mxu0 0.0
    %919 = vmatpush1.xpose.msra.mxu0 %v880
    %920 = vmatprep.subr.mxu0 0.0
    %921 = vmatpush2.xpose.msra.mxu0 0.0
    %922 = vmatprep.subr.mxu0 0.0
    %923 = vmatpush2.xpose.msra.mxu0 0.0
    %924 = vmatprep.subr.mxu0 0.0
    %925 = vmatpush2.xpose.msra.mxu0 0.0
    %926 = vmatprep.subr.mxu0 0.0
    %927 = vmatpush2.xpose.msra.mxu0 0.0
    %928 = vmatprep.subr.mxu0 0.0
    %929 = vmatpush2.xpose.msra.mxu0 0.0
    %930 = vmatprep.subr.mxu0 0.0
    %931 = vmatpush2.xpose.msra.mxu0 0.0
    %932 = vmatprep.subr.mxu0 0.0
    %933 = vmatpush2.xpose.msra.mxu0 0.0
    %934 = vmatprep.subr.mxu0 0.0
    %935 = vmatpush2.xpose.msra.mxu0 0.0
    %936 = vmatprep.subr.mxu0 0.0
    %937 = vmatpush2.xpose.msra.mxu0 0.0
    %938 = vmatprep.subr.mxu0 0.0
    %939 = vmatpush2.xpose.msra.mxu0 0.0
    %940 = vmatprep.subr.mxu0 0.0
    %941 = vmatpush2.xpose.msra.mxu0 0.0
    %942 = vmatprep.subr.mxu0 0.0
    %943 = vmatpush2.xpose.msra.mxu0 0.0
    %944 = vmatprep.subr.mxu0 0.0
    %945 = vmatpush2.xpose.msra.mxu0 0.0
    %946 = vmatprep.subr.mxu0 0.0
    %947 = vmatpush2.xpose.msra.mxu0 0.0
    %948 = vmatprep.subr.mxu0 0.0
    %949 = vmatpush2.xpose.msra.mxu0 0.0
    %950 = vmatprep.subr.mxu0 0.0
    %951 = vmatpush2.xpose.msra.mxu0 0.0
    %952 = vmatprep.mubr.f32.mxu0 0.0
    %953 = vmatmul.mubr.f32.gmra.mxu0 %v877
    %v954 = vpop.f32.mrf.mxu0
    %v955 = vadd.f32 %v872, %v954
    %v956 = vpop.f32.mrf.mxu0
    %957 = vdwg.mxu0
    %v958 = vmax.f32 %v955, 0.0
    %v959 = vmin.f32 %v958, 5.0
    %vm960 = vcmask 156672
    %961 = vst.msk [vmem:[#allocation5] sm:$0x3] %vm960, %v959
    // Predicated region
    $region38: #{group_recommendation_rnn.1} parent=1 // pred_check
      _
    $region39: #{group_recommendation_rnn.1} parent=1 // pred_check_branch
      %963 = sbr.rel (0) target = $region41
    $region40: #{group_recommendation_rnn.1} parent=1 // pred_region
      %s965 = ssub.s32 32, 32
      %966 = vsyncadd [#allocation4], %s965
      %s968 = sshll.u32 [#allocation5], 4
      %s969 = int_to_ptr.vmem [resolvable:$true] %s968
      %971 = dma.vmem_to_hbm [thread:$0]  %s969, 32, %s8, [#allocation4]
    $region41: #{group_recommendation_rnn.1} parent=1 // pred_fallthru
      _
    // Predicated region
    $region42: #{group_recommendation_rnn.1} parent=1 // pred_check
      _
    $region43: #{group_recommendation_rnn.1} parent=1 // pred_check_branch
      %973 = sbr.rel (0) target = $region45
    $region44: #{group_recommendation_rnn.1} parent=1 // pred_region
      %s975 = ssub.s32 32, 32
      %976 = vsyncadd [#allocation7], %s975
      %s978 = sshll.u32 [#allocation6], 4
      %s979 = int_to_ptr.vmem [resolvable:$true] %s978
      %981 = dma.vmem_to_hbm [thread:$0]  %s979, 32, %s9, [#allocation7]
    $region45: #{group_recommendation_rnn.1} parent=1 // pred_fallthru
      _
    // Predicated region
    $region46: #{group_recommendation_rnn.1} parent=1 // pred_check
      _
    $region47: #{group_recommendation_rnn.1} parent=1 // pred_check_branch
      %983 = sbr.rel (0) target = $region49
    $region48: #{group_recommendation_rnn.1} parent=1 // pred_region
      %984 = dma.done [#allocation4], 32
    $region49: #{group_recommendation_rnn.1} parent=1 // pred_fallthru
      _
    // Predicated region
    $region50: #{group_recommendation_rnn.1} parent=1 // pred_check
      _
    $region51: #{group_recommendation_rnn.1} parent=1 // pred_check_branch
      %986 = sbr.rel (0) target = $region53
    $region52: #{group_recommendation_rnn.1} parent=1 // pred_region
      %987 = dma.done [#allocation7], 32
    $region53: #{group_recommendation_rnn.1} parent=1 // pred_fallthru
      _
    %988 = vsyncpa [#allocation3], 1
    %989 = vsyncpa [#allocation4], 1
    %990 = vsyncpa [#allocation7], 1

</llo_original>
